<compile_context>
chip_gen: v5e
topology: v5e:2x2
jax: 0.10.0
libtpu: 0.0.40
codegen_flags: <defaults>
</compile_context>

<pallas_src>
import jax
import jax.numpy as jnp
from jax.experimental import pallas as pl
from jax.experimental.pallas import tpu as pltpu

L = 50          # sequence length expected by Linear(50, 10)
K = 15          # conv kernel size
PAD = K // 2    # 'same' padding
OUT = 10        # linear output features
TB_MAX = 1024   # max batch-tile rows per grid step


def gate_kernel(x_ref, w_ref, b_ref, out_ref):
    """Fused (conv∘linear) matmul + sigmoid + softmax.

    x_ref   : VMEM (TB, L)    input rows
    w_ref   : VMEM (L, OUT)   fused weight (conv folded into linear)
    b_ref   : VMEM (1, OUT)   fused bias
    out_ref : VMEM (TB, OUT)
    """
    y = jnp.dot(x_ref[...], w_ref[...], preferred_element_type=jnp.float32)
    y = y + b_ref[...]
    y = jax.nn.sigmoid(y)

    # softmax over features: post-sigmoid values are in (0,1), so exp is
    # bounded in (1, e) and the usual max-shift is unnecessary.
    e = jnp.exp(y)
    denom = jnp.sum(e, axis=-1, keepdims=True)
    out_ref[...] = (e * pl.reciprocal(denom, approx=True)).astype(out_ref.dtype)


def fuse_params(conv_w, conv_b, lin_w_t, lin_b):
    """Fold Conv1d(1,1,K, padding=K//2) into the Linear(50,10).

    conv_out = x @ T + conv_b,  with T[i, l] = conv_w[i - l + PAD] (0 <= . < K)
    y        = conv_out @ lin_w_t + lin_b
             = x @ (T @ lin_w_t) + conv_b * lin_w_t.sum(0) + lin_b
    """
    i = jnp.arange(L)[:, None]        # input position (row of T)
    l = jnp.arange(L)[None, :]        # output position (col of T)
    k = i - l + PAD
    toeplitz = jnp.where((k >= 0) & (k < K),
                         conv_w[jnp.clip(k, 0, K - 1)], 0.0)        # (L, L)
    w_fused = (toeplitz @ lin_w_t).astype(jnp.float32)              # (L, OUT)
    b_fused = (conv_b[0] * jnp.sum(lin_w_t, axis=0, keepdims=True)
               + lin_b).astype(jnp.float32)                         # (1, OUT)
    return w_fused, b_fused


def gate_forward(x, w_fused, b_fused):
    """x: (B, 1, 50) float32  ->  (B, 1, 10) float32."""
    B = x.shape[0]
    assert x.shape[1] == 1 and x.shape[2] == L

    x2 = x.reshape(B, L).astype(jnp.float32)

    # Batch tiling: one tile if B <= TB_MAX (block dim == full dim is always
    # legal), otherwise 1024-row tiles (multiple of 8 sublanes); ragged last
    # tile is handled by Pallas masked writes (rows are independent).
    tb = B if B <= TB_MAX else TB_MAX
    grid = (pl.cdiv(B, tb),)

    out = pl.pallas_call(
        gate_kernel,
        out_shape=jax.ShapeDtypeStruct((B, OUT), jnp.float32),
        grid=grid,
        in_specs=[
            pl.BlockSpec((tb, L), lambda i: (i, 0)),     # x tile
            pl.BlockSpec((L, OUT), lambda i: (0, 0)),    # fused weight (resident)
            pl.BlockSpec((1, OUT), lambda i: (0, 0)),    # fused bias   (resident)
        ],
        out_specs=pl.BlockSpec((tb, OUT), lambda i: (i, 0)),
        compiler_params=pltpu.CompilerParams(
            dimension_semantics=("parallel",)),
    )(x2, w_fused, b_fused)

    return out.reshape(B, 1, OUT)


def init_params(key):
    """Deterministic init matching nn.Conv1d(1,1,15) / nn.Linear(50,10) shapes."""
    k1, k2, k3, k4 = jax.random.split(key, 4)
    # Conv1d(1, 1, 15): weight (1,1,15) -> flat (15,), bias (1,)
    conv_bound = 1.0 / (1 * K) ** 0.5
    conv_w = jax.random.uniform(k1, (K,), jnp.float32, -conv_bound, conv_bound)
    conv_b = jax.random.uniform(k2, (1,), jnp.float32, -conv_bound, conv_bound)
    # Linear(50, 10): weight (10,50) -> stored transposed (50,10), bias (1,10)
    lin_bound = 1.0 / L ** 0.5
    lin_w_t = jax.random.uniform(k3, (L, OUT), jnp.float32, -lin_bound, lin_bound)
    lin_b = jax.random.uniform(k4, (1, OUT), jnp.float32, -lin_bound, lin_bound)
    return conv_w, conv_b, lin_w_t, lin_b


def reference_forward(x, conv_w, conv_b, lin_w_t, lin_b):
    """Pure-JAX reference of the original (unfused) PyTorch forward."""
    B = x.shape[0]
    x2 = x.reshape(B, L)
    xpad = jnp.pad(x2, ((0, 0), (PAD, PAD)))
    conv = jnp.zeros((B, L), jnp.float32)
    for k in range(K):
        conv = conv + xpad[:, k:k + L] * conv_w[k]
    conv = conv + conv_b[0]
    y = conv @ lin_w_t + lin_b
    y = jax.nn.sigmoid(y)
    y = jax.nn.softmax(y, axis=-1)
    return y.reshape(B, 1, OUT)


if __name__ == "__main__":
    key = jax.random.PRNGKey(0)
    k_params, k_x = jax.random.split(key)

    conv_w, conv_b, lin_w_t, lin_b = init_params(k_params)
    w_fused, b_fused = fuse_params(conv_w, conv_b, lin_w_t, lin_b)

    B = 2
    x = jax.random.normal(k_x, (B, 1, L), jnp.float32)   # PyTorch NCL input

    out = gate_forward(x, w_fused, b_fused)
    out = jax.block_until_ready(out)

    # correctness: compare against the unfused pure-JAX reference
    ref = jax.block_until_ready(reference_forward(x, conv_w, conv_b, lin_w_t, lin_b))
    assert out.shape == (B, 1, OUT)
    # tolerance accounts for the approx reciprocal in the softmax epilogue
    assert jnp.allclose(out, ref, atol=2e-3), float(jnp.max(jnp.abs(out - ref)))
    assert jnp.allclose(jnp.sum(out, axis=-1), 1.0, atol=2e-3)

    print("KERNEL_OK")
</pallas_src>

<mosaic_0001>
module attributes {stable_mosaic.version = 11 : i64} {
  func.func @gate_kernel(%arg0: i32, %arg1: memref<2x50xf32, #tpu.memory_space<vmem>>, %arg2: memref<50x10xf32, #tpu.memory_space<vmem>>, %arg3: memref<1x10xf32, #tpu.memory_space<vmem>>, %arg4: memref<2x10xf32, #tpu.memory_space<vmem>>) attributes {dimension_semantics = [#tpu.dimension_semantics<parallel>], iteration_bounds = array<i64: 1>, scalar_prefetch = 0 : i64, scratch_operands = 0 : i64, tpu.core_type = #tpu.core_type<tc>, window_params = [{transform_indices = @transform_0, window_bounds = array<i64: 2, 50>}, {pipeline_mode = #tpu.pipeline_mode<synchronous>, transform_indices = @transform_1, window_bounds = array<i64: 50, 10>}, {pipeline_mode = #tpu.pipeline_mode<synchronous>, transform_indices = @transform_2, window_bounds = array<i64: 1, 10>}, {transform_indices = @transform_3, window_bounds = array<i64: 2, 10>}]} {
    %c0 = arith.constant 0 : index
    %c0_0 = arith.constant 0 : index
    %0 = vector.load %arg1[%c0, %c0_0] : memref<2x50xf32, #tpu.memory_space<vmem>>, vector<2x50xf32>
    %c0_1 = arith.constant 0 : index
    %c0_2 = arith.constant 0 : index
    %1 = vector.load %arg2[%c0_1, %c0_2] : memref<50x10xf32, #tpu.memory_space<vmem>>, vector<50x10xf32>
    %cst = arith.constant dense<0.000000e+00> : vector<2x10xf32>
    %2 = tpu.matmul %0, %1, %cst {dimension_numbers = #tpu.dot_dimension_numbers<[1], [0], [0], [1], [0, 0, 1, 1], [], []>} : vector<2x50xf32>, vector<50x10xf32>, vector<2x10xf32> -> vector<2x10xf32>
    %c0_3 = arith.constant 0 : index
    %c0_4 = arith.constant 0 : index
    %3 = vector.load %arg3[%c0_3, %c0_4] : memref<1x10xf32, #tpu.memory_space<vmem>>, vector<1x10xf32>
    %4 = vector.broadcast %3 : vector<1x10xf32> to vector<2x10xf32>
    %5 = arith.addf %2, %4 : vector<2x10xf32>
    %6 = arith.negf %5 : vector<2x10xf32>
    %7 = math.exp %6 : vector<2x10xf32>
    %cst_5 = arith.constant 1.000000e+00 : f32
    %8 = vector.broadcast %cst_5 : f32 to vector<2x10xf32>
    %9 = arith.addf %8, %7 : vector<2x10xf32>
    %10 = arith.divf %8, %9 : vector<2x10xf32>
    %11 = math.exp %10 : vector<2x10xf32>
    %cst_6 = arith.constant dense<0.000000e+00> : vector<2xf32>
    %12 = vector.multi_reduction <add>, %11, %cst_6 [1] : vector<2x10xf32> to vector<2xf32>
    %13 = vector.shape_cast %12 : vector<2xf32> to vector<2x1xf32>
    %14 = tpu.reciprocal %13 {approx = true} : vector<2x1xf32> -> vector<2x1xf32>
    %15 = vector.broadcast %14 : vector<2x1xf32> to vector<2x10xf32>
    %16 = arith.mulf %11, %15 : vector<2x10xf32>
    %c0_7 = arith.constant 0 : index
    %c0_8 = arith.constant 0 : index
    %17 = vector.load %arg4[%c0_7, %c0_8] : memref<2x10xf32, #tpu.memory_space<vmem>>, vector<2x10xf32>
    tpu.vector_store %arg4[%c0_7, %c0_8], %16 {strides = array<i32>} : memref<2x10xf32, #tpu.memory_space<vmem>>, vector<2x10xf32>,
    return
  }
  func.func @transform_0(%arg0: i32) -> (i32, i32) {
    %c0_i32 = arith.constant 0 : i32
    %c0_i32_0 = arith.constant 0 : i32
    return %arg0, %c0_i32 : i32, i32
  }
  func.func @transform_1(%arg0: i32) -> (i32, i32) {
    %c0_i32 = arith.constant 0 : i32
    %c0_i32_0 = arith.constant 0 : i32
    %c0_i32_1 = arith.constant 0 : i32
    return %c0_i32, %c0_i32_0 : i32, i32
  }
  func.func @transform_2(%arg0: i32) -> (i32, i32) {
    %c0_i32 = arith.constant 0 : i32
    %c0_i32_0 = arith.constant 0 : i32
    %c0_i32_1 = arith.constant 0 : i32
    return %c0_i32, %c0_i32_0 : i32, i32
  }
  func.func @transform_3(%arg0: i32) -> (i32, i32) {
    %c0_i32 = arith.constant 0 : i32
    %c0_i32_0 = arith.constant 0 : i32
    return %arg0, %c0_i32 : i32, i32
  }
}

</mosaic_0001>

<llo_original>
// kernel: tpu_custom_call.1
$region0: #{tpu_custom_call.1}
  #allocation0 [shape = 'u32[]', space=smem, size = 0x4, offset = 0x4, fixed_abs, tag = 'smem constant byte address 0x4 - core index']
  #allocation1 [shape = 'u32[72,128]{1,0:T(1,128)}', space=vmem, size = 0x9000, scoped, tag = 'internal scratch']
  %s0 = inlined_call_operand.vmem [shape: f32[2,50], index: 0, kind: input, shape index: {}]
  %s1 = inlined_call_operand.vmem [shape: f32[50,10], index: 1, kind: input, shape index: {}]
  %s2 = inlined_call_operand.vmem [shape: f32[1,10], index: 2, kind: input, shape index: {}]
  %s3 = inlined_call_operand.hbm [shape: f32[2,10], index: 3, kind: output, shape index: {}]
  %s4 = sld [smem:[#allocation0]]
  $region22: #{tpu_custom_call.1} parent=0
    _
  %s6 = ssub.s32 1, %s4
  %s7 = scalar_select 0, %s6, %s4
  $region1: #{tpu_custom_call.1} parent=0
    #allocation2 [shape = 'u8[1024]{0}', space=vmem, size = 0x400, scoped, tag = 'output window, operand 0, single buffered']
    #allocation3 [shape = 's32[1]{0}', space=sflag, size = 0x4, scoped, tag = 'scoped memory for tpu_custom_call.1']
    %8 = vsyncpa [#allocation3], 0
    // Predicated region
    $region2: #{tpu_custom_call.1} parent=1 // pred_check
      _
    $region3: #{tpu_custom_call.1} parent=1 // pred_check_branch
      %10 = sbr.rel (0) target = $region5
    $region4: #{tpu_custom_call.1} parent=1 // pred_region
      _
    $region5: #{tpu_custom_call.1} parent=1 // pred_fallthru
      _
    // Predicated region
    $region6: #{tpu_custom_call.1} parent=1 // pred_check
      _
    $region7: #{tpu_custom_call.1} parent=1 // pred_check_branch
      %12 = sbr.rel (0) target = $region9
    $region8: #{tpu_custom_call.1} parent=1 // pred_region
      _
    $region9: #{tpu_custom_call.1} parent=1 // pred_fallthru
      _
    // Predicated region
    $region10: #{tpu_custom_call.1} parent=1 // pred_check
      _
    $region11: #{tpu_custom_call.1} parent=1 // pred_check_branch
      %14 = sbr.rel (0) target = $region13
    $region12: #{tpu_custom_call.1} parent=1 // pred_region
      _
    $region13: #{tpu_custom_call.1} parent=1 // pred_fallthru
      _
    %v15 = vld [vmem:[%s0] sm:$0x3]
    %v16 = vld [vmem:[%s1] sm:$0xff]
    %v17 = vld [vmem:[%s1 + $0x8] sm:$0xff]
    %v18 = vld [vmem:[%s1 + $0x10] sm:$0xff]
    %v19 = vld [vmem:[%s1 + $0x18] sm:$0xff]
    %v20 = vld [vmem:[%s1 + $0x20] sm:$0xff]
    %v21 = vld [vmem:[%s1 + $0x28] sm:$0xff]
    %v22 = vld [vmem:[%s1 + $0x30] sm:$0x3]
    %v23 = vld [vmem:[%s2] sm:$0x1]
    %v25 = vperm.slane %v23, 0
    %vm27 = vcmask 408576
    %v29 = vsel %vm27, %v15, 0
    %vm31 = vcmask 1041408
    %v33 = vsel %vm31, %v22, 0
    %35 = vmatpush.msra.mxu0 0.0
    %36 = vmatpush.msra.mxu0 0.0
    %37 = vmatpush.msra.mxu0 0.0
    %38 = vmatpush.msra.mxu0 0.0
    %39 = vmatpush.msra.mxu0 0.0
    %40 = vmatpush.msra.mxu0 0.0
    %41 = vmatpush.msra.mxu0 0.0
    %42 = vmatpush.msra.mxu0 0.0
    %43 = vmatpush.msra.mxu0 0.0
    %44 = vmatpush.msra.mxu0 %v33
    %45 = vmatpush.msra.mxu0 %v21
    %46 = vmatpush.msra.mxu0 %v20
    %47 = vmatpush.msra.mxu0 %v19
    %48 = vmatpush.msra.mxu0 %v18
    %49 = vmatpush.msra.mxu0 %v17
    %50 = vmatpush.msra.mxu0 %v16
    %51 = vmatmul.f32.gmra.mxu0 %v29
    %v52 = vpop.f32.mrf.mxu0
    %v53 = vadd.f32 %v25, %v52
    %54 = vdwg.mxu0
    %v55 = vxor.u32 %v53, 2147483648
    %v56 = vmul.f32 %v55, 1.442695
    %v57 = vpow.pop %v56
    %v58 = vadd.f32 %v57, 1.0
    %v59 = vrcp.pop %v58
    %v60 = vmul.f32 %v58, %v59
    %v61 = vsub.f32 1.0, %v60
    %v62 = vmul.f32 %v59, %v61
    %v63 = vadd.f32 %v59, %v62
    %vm64 = vweird.f32 %v58
    %vm65 = vweird.f32 %v59
    %vm66 = vmor %vm64, %vm65
    %v67 = vsel %vm66, %v59, %v63
    %v68 = vand.u32 2147483647, %v58
    %vm69 = vcmp.eq.f32.partialorder %v68, 8.507059e+37
    %v70 = vand.u32 %v58, 2147483648
    %v71 = vor.u32 1.1754944e-38, %v70
    %v72 = vsel %vm69, %v71, %v67
    %v73 = vmul.f32 1.0, %v72
    %v74 = vmul.f32 %v73, 1.442695
    %v75 = vpow.pop %v74
    %vm76 = vcmask 74752
    %v77 = vsel %vm76, %v75, 0.0
    %78 = vadd.xlane.f32.xlu0 %v77
    %v79 = vpop.xlane.xlu0 %78
    %v80 = vrcp.pop %v79
    %v81 = vmul.f32 %v75, %v80
    %82 = vst.msk [vmem:[#allocation2] sm:$0x3] %vm76, %v81
    // Predicated region
    $region14: #{tpu_custom_call.1} parent=1 // pred_check
      _
    $region15: #{tpu_custom_call.1} parent=1 // pred_check_branch
      %84 = sbr.rel (0) target = $region17
    $region16: #{tpu_custom_call.1} parent=1 // pred_region
      %86 = vsyncadd [#allocation3], 0
      %s88 = sshll.u32 [#allocation2], 4
      %s89 = int_to_ptr.vmem [resolvable:$true] %s88
      %s90 = sshll.u32 %s3, 4
      %s91 = int_to_ptr.hbm [resolvable:$true] %s90
      %93 = dma.vmem_to_hbm [thread:$0]  %s89, 32, %s91, [#allocation3]
    $region17: #{tpu_custom_call.1} parent=1 // pred_fallthru
      _
    // Predicated region
    $region18: #{tpu_custom_call.1} parent=1 // pred_check
      _
    $region19: #{tpu_custom_call.1} parent=1 // pred_check_branch
      %95 = sbr.rel (0) target = $region21
    $region20: #{tpu_custom_call.1} parent=1 // pred_region
      %97 = dma.done [#allocation3], 32
    $region21: #{tpu_custom_call.1} parent=1 // pred_fallthru
      _
    %98 = vsyncpa [#allocation3], 1

</llo_original>
